<compile_context>
chip_gen: v7x
topology: tpu7x:2x2x1
jax: 0.10.0
libtpu: 0.0.40
codegen_flags: <defaults>
</compile_context>

<pallas_src>
import functools

import numpy as np

import jax
import jax.numpy as jnp
from jax import lax
from jax.experimental import pallas as pl
from jax.experimental.pallas import tpu as pltpu


# ---------------------------------------------------------------------------
# Host-side weight construction (cached per (shape, scale, dtype)).
# ---------------------------------------------------------------------------

def _linear_interp_matrix_np(in_size, out_size, align_corners=False):
    """Row-stochastic (out, in) matrix implementing PyTorch's 1-D linear interp
    (half-pixel centers, negative source index clamped to 0, align_corners=False)."""
    out_idx = np.arange(out_size, dtype=np.float64)
    if align_corners:
        if out_size > 1:
            src = out_idx * (in_size - 1) / (out_size - 1)
        else:
            src = np.zeros((out_size,), np.float64)
    else:
        src = np.maximum((out_idx + 0.5) * (in_size / out_size) - 0.5, 0.0)
    i0 = np.clip(np.floor(src).astype(np.int64), 0, in_size - 1)
    i1 = np.minimum(i0 + 1, in_size - 1)
    frac = src - i0
    W = np.zeros((out_size, in_size), np.float64)
    rows = np.arange(out_size)
    np.add.at(W, (rows, i0), 1.0 - frac)
    np.add.at(W, (rows, i1), frac)
    return W.astype(np.float32)


def _pick_out_h_tile(Ho, Wo, max_bands=64):
    """Output-H tile size: smallest divisor of Ho keeping the band matmul lane
    width (tile*Wo) >= 128, with the number of bands bounded (code size)."""
    divisors = [d for d in range(1, Ho + 1) if Ho % d == 0]
    good = [d for d in divisors if d * Wo >= 128]
    t = min(good) if good else Ho
    while Ho // t > max_bands:
        bigger = [d for d in divisors if d > t]
        if not bigger:
            break
        t = min(bigger)
    return t


@functools.lru_cache(maxsize=64)
def _build_upsample_weights(Di, Hi, Wi, scale, align_corners, dtype):
    """Returns (Wd, Kband, tHo, band_in, h0): shared depth matrix, banded
    kron(Wh, Ww)^T slabs, output-H tile, input-H band size, per-band starts."""
    s = int(scale)
    Do, Ho, Wo = Di * s, Hi * s, Wi * s
    Wd = _linear_interp_matrix_np(Di, Do, align_corners)      # (Do, Di)
    Wh = _linear_interp_matrix_np(Hi, Ho, align_corners)      # (Ho, Hi)
    Ww = _linear_interp_matrix_np(Wi, Wo, align_corners)      # (Wo, Wi)

    tHo = _pick_out_h_tile(Ho, Wo)
    nbands = Ho // tHo
    starts, extents = [], []
    for j in range(nbands):
        slab = Wh[j * tHo:(j + 1) * tHo, :]
        cols = np.nonzero(np.any(slab != 0.0, axis=0))[0]
        starts.append(int(cols.min()))
        extents.append(int(cols.max() - cols.min() + 1))
    band_in = max(extents)
    h0 = [max(0, min(st, Hi - band_in)) for st in starts]     # clamp so window fits

    kband = np.zeros((nbands, band_in * Wi, tHo * Wo), np.float32)
    for j in range(nbands):
        slab = Wh[j * tHo:(j + 1) * tHo, h0[j]:h0[j] + band_in]  # (tHo, band_in)
        kband[j] = np.kron(slab, Ww).T                           # (band_in*Wi, tHo*Wo)

    wd_dev = jnp.asarray(Wd, dtype=dtype)
    kband_dev = jnp.asarray(kband, dtype=dtype)
    return wd_dev, kband_dev, tHo, band_in, tuple(h0)


def _vmem_capacity_bytes():
    try:
        return int(pltpu.get_tpu_info().vmem_capacity_bytes)
    except Exception:
        return 64 * 1024 * 1024  # conservative fallback (v7x per-TensorCore VMEM)


def _pick_channels_per_block(nc, per_ch_bytes, fixed_bytes, budget_bytes):
    avail = budget_bytes - fixed_bytes
    if avail > 0:
        b = max(1, min(nc, avail // max(per_ch_bytes, 1)))
    else:
        b = 1
    # Keep enough grid steps for software pipelining (prologue/epilogue overlap,
    # and work for both v7x TensorCores).
    if nc >= 8:
        b = min(b, max(1, nc // 8))
    elif nc >= 2:
        b = min(b, max(1, nc // 2))
    b = max(1, int(b))
    # Prefer an exact divisor of nc when one is close (no ragged tail); else keep
    # b and let pl.cdiv + masked OOB stores handle the last block.
    best_div = max((d for d in range(1, b + 1) if nc % d == 0), default=1)
    if 2 * best_div >= b:
        b = best_div
    return b


# ---------------------------------------------------------------------------
# Kernel.
# ---------------------------------------------------------------------------

def _make_upsample_kernel(B, Wi, Wo, tHo, band_in, h0, compute_dtype):
    nbands = len(h0)

    def kernel(x_ref, wd_ref, kband_ref, o_ref):
        # x_ref:     (B, Di, Hi*Wi)                 input channels (lane dim = Hi*Wi)
        # wd_ref:    (Do, Di)                       shared depth-interp matrix
        # kband_ref: (nbands, band_in*Wi, tHo*Wo)   banded kron(Wh, Ww)^T slabs
        # o_ref:     (B, Do, Ho*Wo)                 lane-dense output block
        wd = wd_ref[...]

        def channel_body(b, carry):
            xb = x_ref[b].astype(compute_dtype)                       # (Di, Hi*Wi)
            # Depth interpolation: one shared (Do, Di) left-matmul, f32 accumulate.
            tb = jnp.dot(wd, xb, preferred_element_type=jnp.float32)  # (Do, Hi*Wi)
            tb = tb.astype(compute_dtype)
            # Fused H+W interpolation, banded over output-H tiles: each band only
            # contracts the band_in input H-rows that contribute; result is cast
            # and stored immediately (no full-size f32 output temporary).
            for j in range(nbands):
                lo = h0[j] * Wi
                sl = tb[:, lo:lo + band_in * Wi]                      # (Do, band_in*Wi)
                yj = jnp.dot(sl, kband_ref[j],
                             preferred_element_type=jnp.float32)      # (Do, tHo*Wo)
                o_ref[b, :, j * tHo * Wo:(j + 1) * tHo * Wo] = yj.astype(o_ref.dtype)
            return carry

        lax.fori_loop(0, B, channel_body, 0)

    return kernel


# ---------------------------------------------------------------------------
# Wrapper.
# ---------------------------------------------------------------------------

def scale_upsample_trilinear(x, scale_factor=2, align_corners=False):
    """x: (N, C, D, H, W) -> (N, C, s*D, s*H, s*W); trilinear, half-pixel centers."""
    N, C, Di, Hi, Wi = x.shape
    s = int(scale_factor)
    Do, Ho, Wo = Di * s, Hi * s, Wi * s
    NC = N * C

    compute_dtype = jnp.bfloat16 if x.dtype.name == "bfloat16" else jnp.float32
    wsize = 2 if compute_dtype == jnp.bfloat16 else 4
    wd, kband, tHo, band_in, h0 = _build_upsample_weights(
        int(Di), int(Hi), int(Wi), s, bool(align_corners), compute_dtype)
    nbands = Ho // tHo
    itemsize = x.dtype.itemsize

    # ---- honest VMEM accounting: (8,128)-padded tiles, 2x buffers, temporaries ----
    pad = lambda a, m: ((a + m - 1) // m) * m
    in_ch = pad(Di, 8) * pad(Hi * Wi, 128) * itemsize
    out_ch = pad(Do, 8) * pad(Ho * Wo, 128) * itemsize
    per_ch = 2 * (in_ch + out_ch)                                   # double-buffered in + out
    wd_b = 2 * pad(Do, 8) * pad(Di, 128) * wsize
    kb_b = 2 * nbands * pad(band_in * Wi, 8) * pad(tHo * Wo, 128) * wsize
    temps = (pad(Di, 8) * pad(Hi * Wi, 128) * 4                     # xb
             + pad(Do, 8) * pad(Hi * Wi, 128) * 4                   # tb (f32 acc)
             + 2 * pad(Do, 8) * pad(tHo * Wo, 128) * 4)             # yj + cast
    fixed = wd_b + kb_b + temps + (2 << 20)                         # + slop

    capacity = _vmem_capacity_bytes()
    budget = capacity * 3 // 4          # ~48 MiB on v7x (64 MiB), ~96 MiB on v5e/v6e (128 MiB)
    B = _pick_channels_per_block(NC, per_ch, fixed, budget)
    needed = fixed + B * per_ch
    vmem_limit = max(budget, int(needed * 1.2))
    vmem_limit = min(vmem_limit, capacity - (2 << 20))
    vmem_limit = max(vmem_limit, 16 << 20)

    flops = (2 * NC * Do * Di * Hi * Wi
             + 2 * NC * Do * nbands * (band_in * Wi) * (tHo * Wo))
    bytes_accessed = (NC * Di * Hi * Wi * itemsize
                      + NC * Do * Ho * Wo * itemsize
                      + int(wd.size) * wsize + int(kband.size) * wsize)
    cost = pl.CostEstimate(flops=flops, transcendentals=0, bytes_accessed=bytes_accessed)

    x_flat = x.reshape(NC, Di, Hi * Wi)
    kernel = _make_upsample_kernel(B, Wi, Wo, tHo, band_in, h0, compute_dtype)

    out_flat = pl.pallas_call(
        kernel,
        out_shape=jax.ShapeDtypeStruct((NC, Do, Ho * Wo), x.dtype),
        grid_spec=pltpu.PrefetchScalarGridSpec(
            num_scalar_prefetch=0,
            grid=(pl.cdiv(NC, B),),
            in_specs=[
                pl.BlockSpec((B, Di, Hi * Wi), lambda i: (i, 0, 0)),
                pl.BlockSpec((Do, Di), lambda i: (0, 0)),                    # shared Wd
                pl.BlockSpec((nbands, band_in * Wi, tHo * Wo), lambda i: (0, 0, 0)),
            ],
            out_specs=pl.BlockSpec((B, Do, Ho * Wo), lambda i: (i, 0, 0)),
        ),
        compiler_params=pltpu.CompilerParams(
            dimension_semantics=("parallel",),
            vmem_limit_bytes=int(vmem_limit),
        ),
        cost_estimate=cost,
    )(x_flat, wd, kband)

    return out_flat.reshape(N, C, Do, Ho, Wo)


# ---------------------------------------------------------------------------
# Pure-JAX reference (gather-based, exact f32, independent of the matrix path).
# ---------------------------------------------------------------------------

def _reference(x, scale_factor=2, align_corners=False):
    s = int(scale_factor)

    def interp_axis(y, axis):
        in_size = y.shape[axis]
        out_size = in_size * s
        out_idx = jnp.arange(out_size, dtype=jnp.float32)
        if align_corners:
            if out_size > 1:
                src = out_idx * ((in_size - 1) / (out_size - 1))
            else:
                src = jnp.zeros_like(out_idx)
        else:
            src = jnp.maximum((out_idx + 0.5) * (in_size / out_size) - 0.5, 0.0)
        i0 = jnp.clip(jnp.floor(src).astype(jnp.int32), 0, in_size - 1)
        i1 = jnp.minimum(i0 + 1, in_size - 1)
        w1 = src - i0.astype(jnp.float32)
        w0 = 1.0 - w1
        a0 = jnp.take(y, i0, axis=axis)
        a1 = jnp.take(y, i1, axis=axis)
        bshape = [1] * y.ndim
        bshape[axis] = out_size
        return a0 * w0.reshape(bshape) + a1 * w1.reshape(bshape)

    y = x.astype(jnp.float32)
    for ax in (2, 3, 4):
        y = interp_axis(y, ax)
    return y


if __name__ == "__main__":
    def _check(shape, dtype, atol, rtol):
        n, c, d, h, w = shape
        x = jax.random.normal(jax.random.PRNGKey(0), shape, dtype=jnp.float32).astype(dtype)
        out = jax.block_until_ready(scale_upsample_trilinear(x, scale_factor=2))
        assert out.shape == (n, c, 2 * d, 2 * h, 2 * w), out.shape
        assert out.dtype == x.dtype, out.dtype
        ref = _reference(x, scale_factor=2)
        out_f32 = out.astype(jnp.float32)
        err = float(jnp.max(jnp.abs(out_f32 - ref)))
        assert jnp.allclose(out_f32, ref, atol=atol, rtol=rtol), err

    _check((2, 4, 8, 8, 8), jnp.float32, atol=1e-2, rtol=1e-3)    # B=1 path
    _check((2, 16, 8, 8, 8), jnp.float32, atol=1e-2, rtol=1e-3)   # B>1 (fori over channels)
    _check((2, 4, 8, 8, 8), jnp.bfloat16, atol=6e-2, rtol=2e-2)   # bf16 matmul operands

    print("KERNEL_OK")
</pallas_src>

<mosaic_0001>
module attributes {stable_mosaic.version = 11 : i64} {
  func.func @kernel(%arg0: i32, %arg1: memref<1x8x64xf32, #tpu.memory_space<vmem>>, %arg2: memref<16x8xf32, #tpu.memory_space<vmem>>, %arg3: memref<2x40x128xf32, #tpu.memory_space<vmem>>, %arg4: memref<1x16x256xf32, #tpu.memory_space<vmem>>) attributes {dimension_semantics = [#tpu.dimension_semantics<parallel>], iteration_bounds = array<i64: 8>, scalar_prefetch = 0 : i64, scratch_operands = 0 : i64, tpu.core_type = #tpu.core_type<tc>, window_params = [{transform_indices = @transform_0, window_bounds = array<i64: 1, 8, 64>}, {pipeline_mode = #tpu.pipeline_mode<synchronous>, transform_indices = @transform_1, window_bounds = array<i64: 16, 8>}, {pipeline_mode = #tpu.pipeline_mode<synchronous>, transform_indices = @transform_2, window_bounds = array<i64: 2, 40, 128>}, {transform_indices = @transform_3, window_bounds = array<i64: 1, 16, 256>}]} {
    %c0 = arith.constant 0 : index
    %c0_0 = arith.constant 0 : index
    %0 = vector.load %arg2[%c0, %c0_0] : memref<16x8xf32, #tpu.memory_space<vmem>>, vector<16x8xf32>
    %c0_i32 = arith.constant 0 : i32
    %1 = arith.index_cast %c0_i32 : i32 to index
    %c0_1 = arith.constant 0 : index
    %c0_2 = arith.constant 0 : index
    %2 = vector.load %arg1[%1, %c0_1, %c0_2] : memref<1x8x64xf32, #tpu.memory_space<vmem>>, vector<1x8x64xf32>
    %3 = vector.shape_cast %2 : vector<1x8x64xf32> to vector<8x64xf32>
    %cst = arith.constant dense<0.000000e+00> : vector<16x64xf32>
    %4 = tpu.matmul %0, %3, %cst {dimension_numbers = #tpu.dot_dimension_numbers<[1], [0], [0], [1], [0, 0, 1, 1], [], []>} : vector<16x8xf32>, vector<8x64xf32>, vector<16x64xf32> -> vector<16x64xf32>
    %5 = vector.extract_strided_slice %4 {offsets = [0, 0], sizes = [16, 40], strides = [1, 1]} : vector<16x64xf32> to vector<16x40xf32>
    %c0_3 = arith.constant 0 : index
    %c0_4 = arith.constant 0 : index
    %c0_5 = arith.constant 0 : index
    %6 = vector.load %arg3[%c0_3, %c0_4, %c0_5] : memref<2x40x128xf32, #tpu.memory_space<vmem>>, vector<1x40x128xf32>
    %7 = vector.shape_cast %6 : vector<1x40x128xf32> to vector<40x128xf32>
    %cst_6 = arith.constant dense<0.000000e+00> : vector<16x128xf32>
    %8 = tpu.matmul %5, %7, %cst_6 {dimension_numbers = #tpu.dot_dimension_numbers<[1], [0], [0], [1], [0, 0, 1, 1], [], []>} : vector<16x40xf32>, vector<40x128xf32>, vector<16x128xf32> -> vector<16x128xf32>
    %9 = arith.index_cast %c0_i32 : i32 to index
    %c0_7 = arith.constant 0 : index
    %c0_8 = arith.constant 0 : index
    %10 = vector.load %arg4[%9, %c0_7, %c0_8] : memref<1x16x256xf32, #tpu.memory_space<vmem>>, vector<1x16x128xf32>
    %11 = vector.shape_cast %10 : vector<1x16x128xf32> to vector<16x128xf32>
    %12 = vector.shape_cast %8 : vector<16x128xf32> to vector<1x16x128xf32>
    tpu.vector_store %arg4[%9, %c0_7, %c0_8], %12 {strides = array<i32>} : memref<1x16x256xf32, #tpu.memory_space<vmem>>, vector<1x16x128xf32>,
    %13 = vector.extract_strided_slice %4 {offsets = [0, 24], sizes = [16, 40], strides = [1, 1]} : vector<16x64xf32> to vector<16x40xf32>
    %c1 = arith.constant 1 : index
    %c0_9 = arith.constant 0 : index
    %c0_10 = arith.constant 0 : index
    %14 = vector.load %arg3[%c1, %c0_9, %c0_10] : memref<2x40x128xf32, #tpu.memory_space<vmem>>, vector<1x40x128xf32>
    %15 = vector.shape_cast %14 : vector<1x40x128xf32> to vector<40x128xf32>
    %cst_11 = arith.constant dense<0.000000e+00> : vector<16x128xf32>
    %16 = tpu.matmul %13, %15, %cst_11 {dimension_numbers = #tpu.dot_dimension_numbers<[1], [0], [0], [1], [0, 0, 1, 1], [], []>} : vector<16x40xf32>, vector<40x128xf32>, vector<16x128xf32> -> vector<16x128xf32>
    %17 = arith.index_cast %c0_i32 : i32 to index
    %c0_12 = arith.constant 0 : index
    %c128 = arith.constant 128 : index
    %18 = vector.load %arg4[%17, %c0_12, %c128] : memref<1x16x256xf32, #tpu.memory_space<vmem>>, vector<1x16x128xf32>
    %19 = vector.shape_cast %18 : vector<1x16x128xf32> to vector<16x128xf32>
    %20 = vector.shape_cast %16 : vector<16x128xf32> to vector<1x16x128xf32>
    tpu.vector_store %arg4[%17, %c0_12, %c128], %20 {strides = array<i32>} : memref<1x16x256xf32, #tpu.memory_space<vmem>>, vector<1x16x128xf32>,
    %c1_i32 = arith.constant 1 : i32
    return
  }
  func.func @transform_0(%arg0: i32) -> (i32, i32, i32) {
    %c0_i32 = arith.constant 0 : i32
    %c0_i32_0 = arith.constant 0 : i32
    %c0_i32_1 = arith.constant 0 : i32
    return %arg0, %c0_i32, %c0_i32_0 : i32, i32, i32
  }
  func.func @transform_1(%arg0: i32) -> (i32, i32) {
    %c0_i32 = arith.constant 0 : i32
    %c0_i32_0 = arith.constant 0 : i32
    %c0_i32_1 = arith.constant 0 : i32
    return %c0_i32, %c0_i32_0 : i32, i32
  }
  func.func @transform_2(%arg0: i32) -> (i32, i32, i32) {
    %c0_i32 = arith.constant 0 : i32
    %c0_i32_0 = arith.constant 0 : i32
    %c0_i32_1 = arith.constant 0 : i32
    %c0_i32_2 = arith.constant 0 : i32
    return %c0_i32, %c0_i32_0, %c0_i32_1 : i32, i32, i32
  }
  func.func @transform_3(%arg0: i32) -> (i32, i32, i32) {
    %c0_i32 = arith.constant 0 : i32
    %c0_i32_0 = arith.constant 0 : i32
    %c0_i32_1 = arith.constant 0 : i32
    return %arg0, %c0_i32, %c0_i32_0 : i32, i32, i32
  }
}

</mosaic_0001>

<llo_original>
// kernel: tpu_custom_call.1
$region0: #{tpu_custom_call.1}
  #allocation0 [shape = 'u32[]', space=smem, size = 0x4, offset = 0x4, fixed_abs, tag = 'smem constant byte address 0x4 - core index']
  #allocation1 [shape = 'u32[144,128]{1,0:T(1,128)}', space=vmem, size = 0x12000, scoped, tag = 'internal scratch']
  %s0 = inlined_call_operand.hbm [shape: f32[8,8,64], index: 0, kind: input, shape index: {}]
  %s1 = inlined_call_operand.vmem [shape: f32[16,8], index: 1, kind: input, shape index: {}]
  %s2 = inlined_call_operand.hbm [shape: f32[2,40,128], index: 2, kind: input, shape index: {}]
  %s3 = inlined_call_operand.hbm [shape: f32[8,16,256], index: 3, kind: output, shape index: {}]
  %s4 = sld [smem:[#allocation0]]
  $region53: #{tpu_custom_call.1} parent=0
    _
  %s6 = ssub.s32 1, %s4
  %s7 = scalar_select 0, %s6, %s4
  $region1: #{tpu_custom_call.1} parent=0
    #allocation2 [shape = 'u8[8192]{0}', space=vmem, size = 0x2000, scoped, tag = 'input window, operand 0']
    #allocation3 [shape = 's32[2]{0}', space=sflag, size = 0x8, scoped, tag = 'scoped memory for tpu_custom_call.1']
    #allocation4 [shape = 's32[2]{0}', space=sflag, size = 0x8, scoped, tag = 'scoped memory for tpu_custom_call.1']
    #allocation5 [shape = 'u8[40960]{0}', space=vmem, size = 0xa000, scoped, tag = 'input window, operand 2, single buffered']
    #allocation6 [shape = 's32[1]{0}', space=sflag, size = 0x4, scoped, tag = 'scoped memory for tpu_custom_call.1']
    #allocation7 [shape = 'u8[32768]{0}', space=vmem, size = 0x8000, scoped, tag = 'output window, operand 0']
    %8 = vsyncpa [#allocation3], 0
    %s9 = scalar_lea.sflag [#allocation3], 1
    %10 = vsyncpa %s9, 0
    %11 = vsyncpa [#allocation6], 0
    %12 = vsyncpa [#allocation4], 0
    %s13 = scalar_lea.sflag [#allocation4], 1
    %14 = vsyncpa %s13, 0
    loop: start=0, step=1, limit=10
    $region2: #{tpu_custom_call.1} parent=1 // loop_pre_header
      _
    $region3: #{tpu_custom_call.1} parent=1 // loop_header
      %s16 = sphi 0, %s20
      %p17 = scmp.ge.s32.totalorder %s16, 10
      %s26 = sphi 0, %s28
      %s29 = sphi 0, %s26
      %s30 = sphi 0, %s29
      %s46 = sphi 0, %s30
      %s50 = sphi 0, %s50
      %s52 = sphi 0, %s50
      %s53 = sphi 0, %s52
      %s67 = sphi 0, %s53
      %s71 = sphi 0, %s71
      %s73 = sphi 0, %s71
      %s74 = sphi 0, %s73
      %s88 = sphi 0, %s74
      %s94 = sphi 0, %s96
      %s97 = sphi 0, %s94
      %s98 = sphi 0, %s97
      %s114 = sphi 0, %s98
    $region4: #{tpu_custom_call.1} parent=1 // loop_header_branch
      %19 = sbr.rel (%p17) target = $region8
    $region5: #{tpu_custom_call.1} parent=1 // loop_body
      %s21 = ssub.s32 %s16, 1
      %s22 = ssub.s32 %s16, 2
      %s23 = sadd.s32 %s16, 1
      %s24 = ssub.s32 %s16, %s23
      %p25 = scmp.eq.s32.totalorder %s24, 0
      %s27 = sadd.s32 %s26, 1
      %s28 = scalar_select %p25, %s26, %s27
      %p31 = pneg %p25
      %p32 = scmp.eq.s32.totalorder %s16, 7
      %p33 = por %p31, %p32
      %p34 = scmp.ne.s32.totalorder %s26, %s29
      %p35 = scmp.eq.s32.totalorder %s16, 0
      %p36 = por %p34, %p35
      %p37 = scmp.ne.s32.totalorder %s26, %s29
      %p38 = scmp.eq.s32.totalorder %s21, 7
      %p39 = por %p37, %p38
      %p40 = scmp.ne.s32.totalorder %s29, %s30
      %p41 = scmp.eq.s32.totalorder %s21, 0
      %p42 = por %p40, %p41
      %p43 = scmp.ne.s32.totalorder %s29, %s30
      %p44 = scmp.eq.s32.totalorder %s22, 7
      %p45 = por %p43, %p44
      %p47 = scmp.ne.s32.totalorder %s30, %s46
      %p48 = scmp.eq.s32.totalorder %s22, 0
      %p49 = por %p47, %p48
      %s51 = sadd.s32 %s50, 1
      %p54 = scmp.eq.s32.totalorder %s16, 7
      %p55 = scmp.ne.s32.totalorder %s50, %s52
      %p56 = scmp.eq.s32.totalorder %s16, 0
      %p57 = por %p55, %p56
      %p58 = scmp.ne.s32.totalorder %s50, %s52
      %p59 = scmp.eq.s32.totalorder %s21, 7
      %p60 = por %p58, %p59
      %p61 = scmp.ne.s32.totalorder %s52, %s53
      %p62 = scmp.eq.s32.totalorder %s21, 0
      %p63 = por %p61, %p62
      %p64 = scmp.ne.s32.totalorder %s52, %s53
      %p65 = scmp.eq.s32.totalorder %s22, 7
      %p66 = por %p64, %p65
      %p68 = scmp.ne.s32.totalorder %s53, %s67
      %p69 = scmp.eq.s32.totalorder %s22, 0
      %p70 = por %p68, %p69
      %s72 = sadd.s32 %s71, 1
      %p75 = scmp.eq.s32.totalorder %s16, 7
      %p76 = scmp.ne.s32.totalorder %s71, %s73
      %p77 = scmp.eq.s32.totalorder %s16, 0
      %p78 = por %p76, %p77
      %p79 = scmp.ne.s32.totalorder %s71, %s73
      %p80 = scmp.eq.s32.totalorder %s21, 7
      %p81 = por %p79, %p80
      %p82 = scmp.ne.s32.totalorder %s73, %s74
      %p83 = scmp.eq.s32.totalorder %s21, 0
      %p84 = por %p82, %p83
      %p85 = scmp.ne.s32.totalorder %s73, %s74
      %p86 = scmp.eq.s32.totalorder %s22, 7
      %p87 = por %p85, %p86
      %p89 = scmp.ne.s32.totalorder %s74, %s88
      %p90 = scmp.eq.s32.totalorder %s22, 0
      %p91 = por %p89, %p90
      %s92 = ssub.s32 %s16, %s23
      %p93 = scmp.eq.s32.totalorder %s92, 0
      %s95 = sadd.s32 %s94, 1
      %s96 = scalar_select %p93, %s94, %s95
      %p99 = pneg %p93
      %p100 = scmp.eq.s32.totalorder %s16, 7
      %p101 = por %p99, %p100
      %p102 = scmp.ne.s32.totalorder %s94, %s97
      %p103 = scmp.eq.s32.totalorder %s16, 0
      %p104 = por %p102, %p103
      %p105 = scmp.ne.s32.totalorder %s94, %s97
      %p106 = scmp.eq.s32.totalorder %s21, 7
      %p107 = por %p105, %p106
      %p108 = scmp.ne.s32.totalorder %s97, %s98
      %p109 = scmp.eq.s32.totalorder %s21, 0
      %p110 = por %p108, %p109
      %p111 = scmp.ne.s32.totalorder %s97, %s98
      %p112 = scmp.eq.s32.totalorder %s22, 7
      %p113 = por %p111, %p112
      %p115 = scmp.ne.s32.totalorder %s98, %s114
      %p116 = scmp.eq.s32.totalorder %s22, 0
      %p117 = por %p115, %p116
      %p118 = scmp.le.s32.totalorder 1, %s16
      %p119 = scmp.lt.s32.totalorder %s16, 9
      %p120 = pnand %p118, %p119
      %p121 = pneg %p120
      // Predicated region
      $region9: #{tpu_custom_call.1} parent=5 // pred_check
        _
      $region10: #{tpu_custom_call.1} parent=5 // pred_check_branch
        %123 = sbr.rel (%p120) target = $region12
      $region11: #{tpu_custom_call.1} parent=5 // pred_region
        %s124 = ssub.s32 %s16, 1
        // Predicated region
        $region13: #{tpu_custom_call.1} parent=11 // pred_check
          %p125 = pneg %p63
        $region14: #{tpu_custom_call.1} parent=11 // pred_check_branch
          %127 = sbr.rel (%p125) target = $region16
        $region15: #{tpu_custom_call.1} parent=11 // pred_region
          _
        $region16: #{tpu_custom_call.1} parent=11 // pred_fallthru
          _
        // Predicated region
        $region17: #{tpu_custom_call.1} parent=11 // pred_check
          %p128 = pneg %p84
        $region18: #{tpu_custom_call.1} parent=11 // pred_check_branch
          %130 = sbr.rel (%p128) target = $region20
        $region19: #{tpu_custom_call.1} parent=11 // pred_region
          %s132 = ssub.s32 1280, 1280
          %133 = vsyncadd [#allocation6], %s132
          %s134 = sshll.u32 [#allocation5], 4
          %s135 = int_to_ptr.vmem [resolvable:$true] %s134
          %140 = dma.hbm_to_vmem [thread:$0]  %s2, 1280, %s135, [#allocation6], 128, 128, 8
        $region20: #{tpu_custom_call.1} parent=11 // pred_fallthru
          _
      $region12: #{tpu_custom_call.1} parent=5 // pred_fallthru
        _
      %p141 = scmp.lt.s32.totalorder %s16, 8
      // Predicated region
      $region21: #{tpu_custom_call.1} parent=5 // pred_check
        %p142 = pneg %p141
      $region22: #{tpu_custom_call.1} parent=5 // pred_check_branch
        %144 = sbr.rel (%p142) target = $region24
      $region23: #{tpu_custom_call.1} parent=5 // pred_region
        // Predicated region
        $region25: #{tpu_custom_call.1} parent=23 // pred_check
          %p145 = pneg %p36
        $region26: #{tpu_custom_call.1} parent=23 // pred_check_branch
          %147 = sbr.rel (%p145) target = $region28
        $region27: #{tpu_custom_call.1} parent=23 // pred_region
          %s148 = sand.u32 %s26, 1
          %s149 = scalar_lea.sflag [#allocation3], %s148
          %s150 = sand.u32 %s26, 1
          %s151 = smul.addr %s150, 8
          %s152 = scalar_lea.vmem [#allocation2], %s151
          %s154 = ssub.s32 128, 128
          %155 = vsyncadd %s149, %s154
          %s156 = smul.addr %s16, 128
          %s157 = scalar_lea.hbm %s0, %s156
          %s159 = sshll.u32 %s152, 4
          %s160 = int_to_ptr.vmem [resolvable:$true] %s159
          %162 = dma.hbm_to_vmem [thread:$0]  %s157, 128, %s160, %s149
        $region28: #{tpu_custom_call.1} parent=23 // pred_fallthru
          _
      $region24: #{tpu_custom_call.1} parent=5 // pred_fallthru
        _
      %p163 = scmp.le.s32.totalorder 1, %s16
      %p164 = scmp.lt.s32.totalorder %s16, 9
      %p165 = pnand %p163, %p164
      %p166 = pneg %p165
      // Predicated region
      $region29: #{tpu_custom_call.1} parent=5 // pred_check
        _
      $region30: #{tpu_custom_call.1} parent=5 // pred_check_branch
        %168 = sbr.rel (%p165) target = $region32
      $region31: #{tpu_custom_call.1} parent=5 // pred_region
        %s169 = ssub.s32 %s16, 1
        %s170 = sand.u32 %s29, 1
        %s171 = scalar_lea.sflag [#allocation3], %s170
        %s172 = sand.u32 %s29, 1
        %s173 = smul.addr %s172, 8
        %s174 = scalar_lea.vmem [#allocation2], %s173
        // Predicated region
        $region33: #{tpu_custom_call.1} parent=31 // pred_check
          %p175 = pneg %p42
        $region34: #{tpu_custom_call.1} parent=31 // pred_check_branch
          %177 = sbr.rel (%p175) target = $region36
        $region35: #{tpu_custom_call.1} parent=31 // pred_region
          %178 = dma.done %s171, 128
        $region36: #{tpu_custom_call.1} parent=31 // pred_fallthru
          _
        // Predicated region
        $region37: #{tpu_custom_call.1} parent=31 // pred_check
          %p179 = pneg %p84
        $region38: #{tpu_custom_call.1} parent=31 // pred_check_branch
          %181 = sbr.rel (%p179) target = $region40
        $region39: #{tpu_custom_call.1} parent=31 // pred_region
          %182 = dma.done [#allocation6], 1280
        $region40: #{tpu_custom_call.1} parent=31 // pred_fallthru
          _
        %s183 = sand.u32 %s29, 1
        %s184 = scalar_lea.sflag [#allocation3], %s183
        %s185 = sand.u32 %s29, 1
        %s186 = smul.addr %s185, 8
        %s187 = scalar_lea.vmem [#allocation2], %s186
        %p188 = pneg %p42
        %p189 = pneg %p39
        %p190 = pneg %p63
        %p191 = pneg %p60
        %p192 = pneg %p84
        %p193 = pneg %p81
        %p194 = pneg %p110
        %p195 = pneg %p107
        %s196 = sand.u32 %s97, 1
        %s197 = scalar_lea.sflag [#allocation4], %s196
        %s198 = sand.u32 %s97, 1
        %s199 = smul.addr %s198, 32
        %s200 = scalar_lea.vmem [#allocation7], %s199
        %v201 = vld [vmem:[%s1] sm:$0xff]
        %v202 = vld [vmem:[%s1 + $0x8] sm:$0xff]
        %v203 = vld [vmem:[%s174] sm:$0xff]
        %vm204 = vcmask 64512
        %v206 = vsel %vm204, %v201, 0
        %v209 = vsel %vm204, %v202, 0
        %211 = vmatprep.subr.mxu0 0.0
        %212 = vmatpush1.msra.mxu0 %v203
        %213 = vmatprep.subr.mxu0 0.0
        %214 = vmatpush1.msra.mxu0 0.0
        %215 = vmatprep.subr.mxu0 0.0
        %216 = vmatpush1.msra.mxu0 0.0
        %217 = vmatprep.subr.mxu0 0.0
        %218 = vmatpush1.msra.mxu0 0.0
        %219 = vmatprep.subr.mxu0 0.0
        %220 = vmatpush1.msra.mxu0 0.0
        %221 = vmatprep.subr.mxu0 0.0
        %222 = vmatpush1.msra.mxu0 0.0
        %223 = vmatprep.subr.mxu0 0.0
        %224 = vmatpush1.msra.mxu0 0.0
        %225 = vmatprep.subr.mxu0 0.0
        %226 = vmatpush1.msra.mxu0 0.0
        %227 = vmatprep.subr.mxu0 0.0
        %228 = vmatpush1.msra.mxu0 0.0
        %229 = vmatprep.subr.mxu0 0.0
        %230 = vmatpush1.msra.mxu0 0.0
        %231 = vmatprep.subr.mxu0 0.0
        %232 = vmatpush1.msra.mxu0 0.0
        %233 = vmatprep.subr.mxu0 0.0
        %234 = vmatpush1.msra.mxu0 0.0
        %235 = vmatprep.subr.mxu0 0.0
        %236 = vmatpush1.msra.mxu0 0.0
        %237 = vmatprep.subr.mxu0 0.0
        %238 = vmatpush1.msra.mxu0 0.0
        %239 = vmatprep.subr.mxu0 0.0
        %240 = vmatpush1.msra.mxu0 0.0
        %241 = vmatprep.subr.mxu0 0.0
        %242 = vmatpush1.msra.mxu0 0.0
        %243 = vmatprep.subr.mxu0 0.0
        %244 = vmatpush1.msra.mxu0 0.0
        %245 = vmatprep.subr.mxu0 0.0
        %246 = vmatpush1.msra.mxu0 0.0
        %247 = vmatprep.subr.mxu0 0.0
        %248 = vmatpush1.msra.mxu0 0.0
        %249 = vmatprep.subr.mxu0 0.0
        %250 = vmatpush1.msra.mxu0 0.0
        %251 = vmatprep.subr.mxu0 0.0
        %252 = vmatpush1.msra.mxu0 0.0
        %253 = vmatprep.subr.mxu0 0.0
        %254 = vmatpush1.msra.mxu0 0.0
        %255 = vmatprep.subr.mxu0 0.0
        %256 = vmatpush1.msra.mxu0 0.0
        %257 = vmatprep.subr.mxu0 0.0
        %258 = vmatpush1.msra.mxu0 0.0
        %259 = vmatprep.subr.mxu0 0.0
        %260 = vmatpush1.msra.mxu0 0.0
        %261 = vmatprep.subr.mxu0 0.0
        %262 = vmatpush1.msra.mxu0 0.0
        %263 = vmatprep.subr.mxu0 0.0
        %264 = vmatpush1.msra.mxu0 0.0
        %265 = vmatprep.subr.mxu0 0.0
        %266 = vmatpush1.msra.mxu0 0.0
        %267 = vmatprep.subr.mxu0 0.0
        %268 = vmatpush1.msra.mxu0 0.0
        %269 = vmatprep.subr.mxu0 0.0
        %270 = vmatpush1.msra.mxu0 0.0
        %271 = vmatprep.subr.mxu0 0.0
        %272 = vmatpush1.msra.mxu0 0.0
        %273 = vmatprep.subr.mxu0 0.0
        %274 = vmatpush1.msra.mxu0 0.0
        %275 = vmatprep.mubr.f32.mxu0 0.0
        %276 = vmatmul.mubr.f32.gmra.mrb[0].mxu0 %v206
        %v277 = vpop.f32.mrb[0].mxu0
        %v278 = vadd.f32 0.0, %v277
        %v279 = vpop.f32.mrb[0].mxu0
        %280 = vmatprep.mubr.f32.mxu0 0.0
        %281 = vmatmul.mubr.f32.gmra.mrb[0].mxu0 %v209
        %v282 = vpop.f32.mrb[0].mxu0
        %v283 = vadd.f32 0.0, %v282
        %v284 = vpop.f32.mrb[0].mxu0
        %285 = vdwg.mxu0
        %v286 = vld [vmem:[#allocation5] sm:$0xff]
        %v287 = vld [vmem:[#allocation5 + $0x8] sm:$0xff]
        %v288 = vld [vmem:[#allocation5 + $0x10] sm:$0xff]
        %v289 = vld [vmem:[#allocation5 + $0x18] sm:$0xff]
        %v290 = vld [vmem:[#allocation5 + $0x20] sm:$0xff]
        %vm291 = vcmask 326656
        %v293 = vsel %vm291, %v278, 0
        %v296 = vsel %vm291, %v283, 0
        %298 = vmatprep.subr.mxu0 0.0
        %299 = vmatpush1.msra.mxu0 %v286
        %300 = vmatprep.subr.mxu0 0.0
        %301 = vmatpush1.msra.mxu0 %v287
        %302 = vmatprep.subr.mxu0 0.0
        %303 = vmatpush1.msra.mxu0 %v288
        %304 = vmatprep.subr.mxu0 0.0
        %305 = vmatpush1.msra.mxu0 %v289
        %306 = vmatprep.subr.mxu0 0.0
        %307 = vmatpush1.msra.mxu0 %v290
        %308 = vmatprep.subr.mxu0 0.0
        %309 = vmatpush1.msra.mxu0 0.0
        %310 = vmatprep.subr.mxu0 0.0
        %311 = vmatpush1.msra.mxu0 0.0
        %312 = vmatprep.subr.mxu0 0.0
        %313 = vmatpush1.msra.mxu0 0.0
        %314 = vmatprep.subr.mxu0 0.0
        %315 = vmatpush1.msra.mxu0 0.0
        %316 = vmatprep.subr.mxu0 0.0
        %317 = vmatpush1.msra.mxu0 0.0
        %318 = vmatprep.subr.mxu0 0.0
        %319 = vmatpush1.msra.mxu0 0.0
        %320 = vmatprep.subr.mxu0 0.0
        %321 = vmatpush1.msra.mxu0 0.0
        %322 = vmatprep.subr.mxu0 0.0
        %323 = vmatpush1.msra.mxu0 0.0
        %324 = vmatprep.subr.mxu0 0.0
        %325 = vmatpush1.msra.mxu0 0.0
        %326 = vmatprep.subr.mxu0 0.0
        %327 = vmatpush1.msra.mxu0 0.0
        %328 = vmatprep.subr.mxu0 0.0
        %329 = vmatpush1.msra.mxu0 0.0
        %330 = vmatprep.subr.mxu0 0.0
        %331 = vmatpush1.msra.mxu0 0.0
        %332 = vmatprep.subr.mxu0 0.0
        %333 = vmatpush1.msra.mxu0 0.0
        %334 = vmatprep.subr.mxu0 0.0
        %335 = vmatpush1.msra.mxu0 0.0
        %336 = vmatprep.subr.mxu0 0.0
        %337 = vmatpush1.msra.mxu0 0.0
        %338 = vmatprep.subr.mxu0 0.0
        %339 = vmatpush1.msra.mxu0 0.0
        %340 = vmatprep.subr.mxu0 0.0
        %341 = vmatpush1.msra.mxu0 0.0
        %342 = vmatprep.subr.mxu0 0.0
        %343 = vmatpush1.msra.mxu0 0.0
        %344 = vmatprep.subr.mxu0 0.0
        %345 = vmatpush1.msra.mxu0 0.0
        %346 = vmatprep.subr.mxu0 0.0
        %347 = vmatpush1.msra.mxu0 0.0
        %348 = vmatprep.subr.mxu0 0.0
        %349 = vmatpush1.msra.mxu0 0.0
        %350 = vmatprep.subr.mxu0 0.0
        %351 = vmatpush1.msra.mxu0 0.0
        %352 = vmatprep.subr.mxu0 0.0
        %353 = vmatpush1.msra.mxu0 0.0
        %354 = vmatprep.subr.mxu0 0.0
        %355 = vmatpush1.msra.mxu0 0.0
        %356 = vmatprep.subr.mxu0 0.0
        %357 = vmatpush1.msra.mxu0 0.0
        %358 = vmatprep.subr.mxu0 0.0
        %359 = vmatpush1.msra.mxu0 0.0
        %360 = vmatprep.subr.mxu0 0.0
        %361 = vmatpush1.msra.mxu0 0.0
        %362 = vmatprep.mubr.f32.mxu0 0.0
        %363 = vmatmul.mubr.f32.gmra.mrb[0].mxu0 %v293
        %v364 = vpop.f32.mrb[0].mxu0
        %v365 = vadd.f32 0.0, %v364
        %v366 = vpop.f32.mrb[0].mxu0
        %367 = vmatprep.mubr.f32.mxu0 0.0
        %368 = vmatmul.mubr.f32.gmra.mrb[0].mxu0 %v296
        %v369 = vpop.f32.mrb[0].mxu0
        %v370 = vadd.f32 0.0, %v369
        %v371 = vpop.f32.mrb[0].mxu0
        %372 = vdwg.mxu0
        %373 = vst [vmem:[%s200] sm:$0xff] %v365
        %374 = vst [vmem:[%s200 + $0x10] sm:$0xff] %v370
        %s375 = scalar_lea.vmem [#allocation5], 40
        %v376 = vld [vmem:[%s375] sm:$0xff]
        %v377 = vld [vmem:[%s375 + $0x8] sm:$0xff]
        %v378 = vld [vmem:[%s375 + $0x10] sm:$0xff]
        %v379 = vld [vmem:[%s375 + $0x18] sm:$0xff]
        %v380 = vld [vmem:[%s375 + $0x20] sm:$0xff]
        %381 = vrot.lane.b32.xlu0 %v278, 104
        %v382 = vpop.permute.xlu0 %381
        %383 = vrot.lane.b32.xlu0 %v283, 104
        %v384 = vpop.permute.xlu0 %383
        %v385 = vsel %vm291, %v382, 0
        %v387 = vsel %vm291, %v384, 0
        %389 = vmatprep.subr.mxu0 0.0
        %390 = vmatpush1.msra.mxu0 %v376
        %391 = vmatprep.subr.mxu0 0.0
        %392 = vmatpush1.msra.mxu0 %v377
        %393 = vmatprep.subr.mxu0 0.0
        %394 = vmatpush1.msra.mxu0 %v378
        %395 = vmatprep.subr.mxu0 0.0
        %396 = vmatpush1.msra.mxu0 %v379
        %397 = vmatprep.subr.mxu0 0.0
        %398 = vmatpush1.msra.mxu0 %v380
        %399 = vmatprep.subr.mxu0 0.0
        %400 = vmatpush1.msra.mxu0 0.0
        %401 = vmatprep.subr.mxu0 0.0
        %402 = vmatpush1.msra.mxu0 0.0
        %403 = vmatprep.subr.mxu0 0.0
        %404 = vmatpush1.msra.mxu0 0.0
        %405 = vmatprep.subr.mxu0 0.0
        %406 = vmatpush1.msra.mxu0 0.0
        %407 = vmatprep.subr.mxu0 0.0
        %408 = vmatpush1.msra.mxu0 0.0
        %409 = vmatprep.subr.mxu0 0.0
        %410 = vmatpush1.msra.mxu0 0.0
        %411 = vmatprep.subr.mxu0 0.0
        %412 = vmatpush1.msra.mxu0 0.0
        %413 = vmatprep.subr.mxu0 0.0
        %414 = vmatpush1.msra.mxu0 0.0
        %415 = vmatprep.subr.mxu0 0.0
        %416 = vmatpush1.msra.mxu0 0.0
        %417 = vmatprep.subr.mxu0 0.0
        %418 = vmatpush1.msra.mxu0 0.0
        %419 = vmatprep.subr.mxu0 0.0
        %420 = vmatpush1.msra.mxu0 0.0
        %421 = vmatprep.subr.mxu0 0.0
        %422 = vmatpush1.msra.mxu0 0.0
        %423 = vmatprep.subr.mxu0 0.0
        %424 = vmatpush1.msra.mxu0 0.0
        %425 = vmatprep.subr.mxu0 0.0
        %426 = vmatpush1.msra.mxu0 0.0
        %427 = vmatprep.subr.mxu0 0.0
        %428 = vmatpush1.msra.mxu0 0.0
        %429 = vmatprep.subr.mxu0 0.0
        %430 = vmatpush1.msra.mxu0 0.0
        %431 = vmatprep.subr.mxu0 0.0
        %432 = vmatpush1.msra.mxu0 0.0
        %433 = vmatprep.subr.mxu0 0.0
        %434 = vmatpush1.msra.mxu0 0.0
        %435 = vmatprep.subr.mxu0 0.0
        %436 = vmatpush1.msra.mxu0 0.0
        %437 = vmatprep.subr.mxu0 0.0
        %438 = vmatpush1.msra.mxu0 0.0
        %439 = vmatprep.subr.mxu0 0.0
        %440 = vmatpush1.msra.mxu0 0.0
        %441 = vmatprep.subr.mxu0 0.0
        %442 = vmatpush1.msra.mxu0 0.0
        %443 = vmatprep.subr.mxu0 0.0
        %444 = vmatpush1.msra.mxu0 0.0
        %445 = vmatprep.subr.mxu0 0.0
        %446 = vmatpush1.msra.mxu0 0.0
        %447 = vmatprep.subr.mxu0 0.0
        %448 = vmatpush1.msra.mxu0 0.0
        %449 = vmatprep.subr.mxu0 0.0
        %450 = vmatpush1.msra.mxu0 0.0
        %451 = vmatprep.subr.mxu0 0.0
        %452 = vmatpush1.msra.mxu0 0.0
        %453 = vmatprep.mubr.f32.mxu0 0.0
        %454 = vmatmul.mubr.f32.gmra.mrb[0].mxu0 %v385
        %v455 = vpop.f32.mrb[0].mxu0
        %v456 = vadd.f32 0.0, %v455
        %v457 = vpop.f32.mrb[0].mxu0
        %458 = vmatprep.mubr.f32.mxu0 0.0
        %459 = vmatmul.mubr.f32.gmra.mrb[0].mxu0 %v387
        %v460 = vpop.f32.mrb[0].mxu0
        %v461 = vadd.f32 0.0, %v460
        %v462 = vpop.f32.mrb[0].mxu0
        %463 = vdwg.mxu0
        %464 = vst [vmem:[%s200 + $0x8] sm:$0xff] %v456
        %465 = vst [vmem:[%s200 + $0x18] sm:$0xff] %v461
        %s466 = sand.u32 %s97, 1
        %s467 = scalar_lea.sflag [#allocation4], %s466
        %s468 = sand.u32 %s97, 1
        %s469 = smul.addr %s468, 32
        %s470 = scalar_lea.vmem [#allocation7], %s469
        // Predicated region
        $region41: #{tpu_custom_call.1} parent=31 // pred_check
          %p471 = pneg %p107
        $region42: #{tpu_custom_call.1} parent=31 // pred_check_branch
          %473 = sbr.rel (%p471) target = $region44
        $region43: #{tpu_custom_call.1} parent=31 // pred_region
          %s475 = ssub.s32 512, 512
          %476 = vsyncadd %s467, %s475
          %s477 = smul.addr %s21, 4
          %s478 = smul.addr %s477, 128
          %s479 = scalar_lea.hbm %s3, %s478
          %s480 = sshll.u32 %s470, 4
          %s481 = int_to_ptr.vmem [resolvable:$true] %s480
          %486 = dma.vmem_to_hbm [thread:$0]  %s481, 512, %s479, %s467, 256, 256, 16
        $region44: #{tpu_custom_call.1} parent=31 // pred_fallthru
          _
      $region32: #{tpu_custom_call.1} parent=5 // pred_fallthru
        _
      %p487 = scmp.le.s32.totalorder 2, %s16
      // Predicated region
      $region45: #{tpu_custom_call.1} parent=5 // pred_check
        %p488 = pneg %p487
      $region46: #{tpu_custom_call.1} parent=5 // pred_check_branch
        %490 = sbr.rel (%p488) target = $region48
      $region47: #{tpu_custom_call.1} parent=5 // pred_region
        %s491 = ssub.s32 %s16, 2
        // Predicated region
        $region49: #{tpu_custom_call.1} parent=47 // pred_check
          %p492 = pneg %p113
        $region50: #{tpu_custom_call.1} parent=47 // pred_check_branch
          %494 = sbr.rel (%p492) target = $region52
        $region51: #{tpu_custom_call.1} parent=47 // pred_region
          %s495 = sand.u32 %s98, 1
          %s496 = scalar_lea.sflag [#allocation4], %s495
          %s497 = sand.u32 %s98, 1
          %s498 = smul.addr %s497, 32
          %s499 = scalar_lea.vmem [#allocation7], %s498
          %500 = dma.done %s496, 512
        $region52: #{tpu_custom_call.1} parent=47 // pred_fallthru
          _
      $region48: #{tpu_custom_call.1} parent=5 // pred_fallthru
        _
    $region6: #{tpu_custom_call.1} parent=1 // loop_footer
      %s20 = sadd.s32 1, %s16
    $region7: #{tpu_custom_call.1} parent=1 // loop_footer_branch
      %15 = sbr.rel target = $region3
    $region8: #{tpu_custom_call.1} parent=1 // loop_exit
      _
    %501 = vsyncpa [#allocation3], 1
    %s502 = scalar_lea.sflag [#allocation3], 1
    %503 = vsyncpa %s502, 1
    %504 = vsyncpa [#allocation6], 1
    %505 = vsyncpa [#allocation4], 1
    %s506 = scalar_lea.sflag [#allocation4], 1
    %507 = vsyncpa %s506, 1

</llo_original>
